<compile_context>
chip_gen: v7x
topology: tpu7x:2x2x1
jax: 0.10.0
libtpu: 0.0.40
codegen_flags: <defaults>
</compile_context>

<pallas_src>
import functools

import jax
import jax.numpy as jnp
from jax.experimental import pallas as pl
from jax.experimental.pallas import tpu as pltpu

# --------------------------------------------------------------- tunables
_TILE_TARGET_BYTES = 2 << 20     # ~2 MiB row tiles (measured HBM-roofline sweet spot)
_MAX_ROW_TILE = 8192             # raised cap (was 1024)
_FUSED_MAX_F32_BYTES = 2 << 20   # single-pass fused path when the f32 slab <= this
_STAT_CORES = 2                  # leading "parallel" axis for the stats reduction


def _round_up(v, m):
    return (v + m - 1) // m * m


def _choose_row_tile(n_rows, width, itemsize):
    """Large row tile (~2 MiB, multiple of 16, <= _MAX_ROW_TILE, <= padded N)."""
    row_bytes = max(1, int(width) * int(itemsize))
    tm = _TILE_TARGET_BYTES // row_bytes
    tm = max(16, min(_MAX_ROW_TILE, (tm // 16) * 16))
    tm = min(tm, _round_up(n_rows, 8))
    return int(max(8, (tm // 8) * 8))


def _lane_pack_factor(n_rows, d):
    """k such that [N, D] -> [N/k, k*D] fills the 128 vreg lanes (for D < 128)."""
    if d >= 128:
        return 1
    k = max(1, 128 // d)
    while k > 1 and n_rows % k:
        k -= 1
    return k


def _use_fused(n, d):
    return n * d * 4 <= _FUSED_MAX_F32_BYTES


# ----------------------------------------------------------------- kernels

def _col_stats_kernel(x_ref, sum_ref, sq_ref, *, tm, n_rows, steps_per_core):
    """Per-column sum / sum-of-squares, accumulated into (8, W) per-core slabs."""
    c = pl.program_id(0)          # "parallel" axis -> one partial per TensorCore
    i = pl.program_id(1)          # "arbitrary" reduction over row tiles

    @pl.when(i == 0)
    def _():
        sum_ref[...] = jnp.zeros_like(sum_ref)
        sq_ref[...] = jnp.zeros_like(sq_ref)

    block = c * steps_per_core + i
    rows = block * tm + jax.lax.broadcasted_iota(jnp.int32, (tm, 1), 0)
    x = jnp.where(rows < n_rows, x_ref[...].astype(jnp.float32), 0.0)
    xr = x.reshape(tm // 8, 8, x.shape[-1])          # cross-vreg VPU adds only
    sum_ref[...] += jnp.sum(xr, axis=0)
    sq_ref[...] += jnp.sum(xr * xr, axis=0)


def _affine_kernel(x_ref, scale_ref, shift_ref, o_ref, *, residual, skip_weight):
    """y = x*scale + shift; if residual: y = x + (x*scale + shift)*skip_weight."""
    x = x_ref[...].astype(jnp.float32)
    y = x * scale_ref[...] + shift_ref[...]
    if residual:
        y = x + y * jnp.float32(skip_weight)
    o_ref[...] = y.astype(o_ref.dtype)


def _fused_norm_kernel(x_ref, gamma_ref, beta_ref, o_ref, *, mode, residual,
                       skip_weight, eps):
    """Single-pass stats + affine when the whole [N, D] slab is VMEM-resident."""
    x = x_ref[...].astype(jnp.float32)
    n = x.shape[0]
    mean = jnp.sum(x, axis=0, keepdims=True) * (1.0 / n)
    if mode == 'batch':
        var = jnp.sum(x * x, axis=0, keepdims=True) * (1.0 / n) - mean * mean
        var = jnp.maximum(var, 0.0)
        rstd = jax.lax.rsqrt(var + eps)
        scale = gamma_ref[...] * rstd
        y = x * scale + (beta_ref[...] - mean * scale)
    else:  # 'pair'
        xc = x - mean
        row_sq = jnp.sum(xc * xc, axis=1, keepdims=True)
        tot = jnp.sum(row_sq, axis=0, keepdims=True)
        y = xc * jax.lax.rsqrt(tot * (1.0 / n) + 1e-6)
    if residual:
        y = x + y * jnp.float32(skip_weight)
    o_ref[...] = y.astype(o_ref.dtype)


def _group_stats_kernel(x_ref, s_ref, gsum_ref, gsq_ref, *, tm, n_rows):
    """Column stats of the score-scaled concat without materializing [N, G*D]."""
    i = pl.program_id(0)

    @pl.when(i == 0)
    def _():
        gsum_ref[...] = jnp.zeros_like(gsum_ref)
        gsq_ref[...] = jnp.zeros_like(gsq_ref)

    rows = i * tm + jax.lax.broadcasted_iota(jnp.int32, (tm, 1), 0)
    valid = rows < n_rows
    x = jnp.where(valid, x_ref[...].astype(jnp.float32), 0.0)
    s = jnp.where(valid, s_ref[...].astype(jnp.float32), 0.0)
    dn = (((0,), (0,)), ((), ()))                     # contract the row axis
    gsum_ref[...] += jax.lax.dot_general(s, x, dn,
                                         preferred_element_type=jnp.float32)
    gsq_ref[...] += jax.lax.dot_general(s * s, x * x, dn,
                                        preferred_element_type=jnp.float32)


def _group_affine_kernel(x_ref, s_ref, scale_ref, shift_ref, o_ref, *, skip_weight):
    """out = x + w * (x * (score @ scale_mat) + sum_g shift_g)  (stays [N, D])."""
    x = x_ref[...].astype(jnp.float32)
    s = s_ref[...].astype(jnp.float32)
    eff_scale = jnp.dot(s, scale_ref[...], preferred_element_type=jnp.float32)
    y = x + jnp.float32(skip_weight) * (x * eff_scale + shift_ref[...])
    o_ref[...] = y.astype(o_ref.dtype)


# ---------------------------------------------------------------- wrappers

def _column_stats(x):
    """Exact per-column sum and sum-of-squares of [N, D] via Pallas (two-pass path)."""
    n, d = x.shape
    k = _lane_pack_factor(n, d)
    xp = x.reshape(n // k, k * d) if k > 1 else x     # lane-dense view, no data move
    rows, w = xp.shape
    tm = _choose_row_tile(rows, w, x.dtype.itemsize)
    nsteps = pl.cdiv(rows, tm)
    spc = pl.cdiv(nsteps, _STAT_CORES)

    def x_map(c, i):
        # clamp so the (possibly) overflowing last step re-reads a valid block;
        # the in-kernel row mask zeroes its contribution.
        return (jnp.minimum(c * spc + i, nsteps - 1), 0)

    out_spec = pl.BlockSpec((8, w), lambda c, i: (c, 0))
    sums, sqs = pl.pallas_call(
        functools.partial(_col_stats_kernel, tm=tm, n_rows=rows,
                          steps_per_core=spc),
        out_shape=(jax.ShapeDtypeStruct((_STAT_CORES * 8, w), jnp.float32),) * 2,
        grid=(_STAT_CORES, spc),
        in_specs=[pl.BlockSpec((tm, w), x_map)],
        out_specs=(out_spec, out_spec),
        compiler_params=pltpu.CompilerParams(
            dimension_semantics=("parallel", "arbitrary")),
    )(xp)
    col_sum = sums.reshape(-1, k, d).sum(axis=(0, 1))
    col_sq = sqs.reshape(-1, k, d).sum(axis=(0, 1))
    return col_sum, col_sq


def _affine(x, scale, shift, *, residual=False, skip_weight=0.0):
    """Row-tiled y = x*scale + shift (+ optional skip residual), lane-packed."""
    n, d = x.shape
    k = _lane_pack_factor(n, d)
    xp = x.reshape(n // k, k * d) if k > 1 else x
    rows, w = xp.shape
    scale_p = jnp.tile(scale.astype(jnp.float32).reshape(-1), k).reshape(1, w)
    shift_p = jnp.tile(shift.astype(jnp.float32).reshape(-1), k).reshape(1, w)
    tm = _choose_row_tile(rows, w, x.dtype.itemsize)
    out = pl.pallas_call(
        functools.partial(_affine_kernel, residual=residual,
                          skip_weight=float(skip_weight)),
        out_shape=jax.ShapeDtypeStruct((rows, w), x.dtype),
        grid=(pl.cdiv(rows, tm),),
        in_specs=[pl.BlockSpec((tm, w), lambda i: (i, 0)),
                  pl.BlockSpec((1, w), lambda i: (0, 0)),
                  pl.BlockSpec((1, w), lambda i: (0, 0))],
        out_specs=pl.BlockSpec((tm, w), lambda i: (i, 0)),
        compiler_params=pltpu.CompilerParams(dimension_semantics=("parallel",)),
    )(xp, scale_p, shift_p)
    return out.reshape(n, d) if k > 1 else out


def _fused_norm(x, gamma, beta, *, mode, residual=False, skip_weight=0.0, eps=1e-5):
    """Single-pass fused stats+affine (whole slab resident in VMEM)."""
    n, d = x.shape
    return pl.pallas_call(
        functools.partial(_fused_norm_kernel, mode=mode, residual=residual,
                          skip_weight=float(skip_weight), eps=float(eps)),
        out_shape=jax.ShapeDtypeStruct((n, d), x.dtype),
    )(x, gamma.astype(jnp.float32).reshape(1, d),
      beta.astype(jnp.float32).reshape(1, d))


def _batchnorm_scale_shift(x, gamma, beta, eps=1e-5):
    """Training-mode BatchNorm1d batch stats folded into scale/shift."""
    n = x.shape[0]
    s, ss = _column_stats(x)
    mean = s / n
    var = jnp.maximum(ss / n - mean * mean, 0.0)      # clamp: cancellation safety
    rstd = jax.lax.rsqrt(var + eps)
    scale = gamma * rstd
    shift = beta - mean * scale
    return scale, shift


def _group_norm_fused(x, score, gamma, beta, *, skip_weight, eps=1e-5):
    """'group' mode (G>1) without ever materializing the [N, G*D] slab."""
    n, d = x.shape
    g = score.shape[1]
    tm = _choose_row_tile(n, d + g, x.dtype.itemsize)

    gsum, gsq = pl.pallas_call(
        functools.partial(_group_stats_kernel, tm=tm, n_rows=n),
        out_shape=(jax.ShapeDtypeStruct((g, d), jnp.float32),) * 2,
        grid=(pl.cdiv(n, tm),),
        in_specs=[pl.BlockSpec((tm, d), lambda i: (i, 0)),
                  pl.BlockSpec((tm, g), lambda i: (i, 0))],
        out_specs=(pl.BlockSpec((g, d), lambda i: (0, 0)),
                   pl.BlockSpec((g, d), lambda i: (0, 0))),
        compiler_params=pltpu.CompilerParams(dimension_semantics=("arbitrary",)),
    )(x, score)

    mean = gsum / n
    var = jnp.maximum(gsq / n - mean * mean, 0.0)
    rstd = jax.lax.rsqrt(var + eps)
    scale_mat = gamma.reshape(g, d) * rstd
    shift_mat = beta.reshape(g, d) - mean * scale_mat
    shift_sum = shift_mat.sum(axis=0, keepdims=True)

    return pl.pallas_call(
        functools.partial(_group_affine_kernel, skip_weight=float(skip_weight)),
        out_shape=jax.ShapeDtypeStruct((n, d), x.dtype),
        grid=(pl.cdiv(n, tm),),
        in_specs=[pl.BlockSpec((tm, d), lambda i: (i, 0)),
                  pl.BlockSpec((tm, g), lambda i: (i, 0)),
                  pl.BlockSpec((g, d), lambda i: (0, 0)),
                  pl.BlockSpec((1, d), lambda i: (0, 0))],
        out_specs=pl.BlockSpec((tm, d), lambda i: (i, 0)),
        compiler_params=pltpu.CompilerParams(dimension_semantics=("parallel",)),
    )(x, score, scale_mat.astype(jnp.float32), shift_sum.astype(jnp.float32))


# ------------------------------------------------------------ module mirror

class BatchNormPallas:
    """JAX/Pallas mirror of the PyTorch `batch_norm` module (training forward)."""

    def __init__(self, dim_hidden, type_norm, skip_connect=False,
                 num_groups=1, skip_weight=0.005, eps=1e-5, key=None):
        self.type_norm = type_norm
        self.skip_connect = skip_connect
        self.num_groups = num_groups
        self.skip_weight = skip_weight
        self.dim_hidden = dim_hidden
        self.eps = eps
        if type_norm == 'batch':
            self.gamma = jnp.ones((dim_hidden,), jnp.float32)
            self.beta = jnp.zeros((dim_hidden,), jnp.float32)
        elif type_norm == 'group':
            d = dim_hidden * num_groups
            self.gamma = jnp.ones((d,), jnp.float32)
            self.beta = jnp.zeros((d,), jnp.float32)
            if key is None:
                key = jax.random.PRNGKey(0)
            kw, kb = jax.random.split(key)
            bound = 1.0 / (dim_hidden ** 0.5)
            self.w_group = jax.random.uniform(kw, (num_groups, dim_hidden),
                                              jnp.float32, -bound, bound)
            self.b_group = jax.random.uniform(kb, (num_groups,),
                                              jnp.float32, -bound, bound)
        # TODO(synk): BatchNorm1d running-mean/var buffer updates (momentum=0.3)
        # are training-state side effects and are not modeled in-kernel.

    # ---- helpers -----------------------------------------------------------
    def _batch_like(self, x, residual):
        n, d = x.shape
        if _use_fused(n, d):
            return _fused_norm(x, self.gamma, self.beta, mode='batch',
                               residual=residual, skip_weight=self.skip_weight,
                               eps=self.eps)
        scale, shift = _batchnorm_scale_shift(x, self.gamma, self.beta, self.eps)
        return _affine(x, scale, shift, residual=residual,
                       skip_weight=self.skip_weight)

    def _pair(self, x):
        n, d = x.shape
        if _use_fused(n, d):
            return _fused_norm(x, jnp.ones((d,), jnp.float32),
                               jnp.zeros((d,), jnp.float32), mode='pair')
        s, ss = _column_stats(x)
        mean = s / n
        centered_sq = jnp.maximum(jnp.sum(ss - n * mean * mean), 0.0)
        inv = jax.lax.rsqrt(centered_sq / n + 1e-6)
        scale = jnp.ones((d,), jnp.float32) * inv
        shift = -mean * inv
        return _affine(x, scale, shift)

    # ---- forward -----------------------------------------------------------
    def __call__(self, x):
        if self.type_norm == 'None':
            return x
        if self.type_norm == 'batch':
            return self._batch_like(x, residual=False)
        if self.type_norm == 'pair':
            return self._pair(x)
        if self.type_norm == 'group':
            if self.num_groups == 1:
                return self._batch_like(x, residual=True)
            # TODO(synk): the tiny [N,D]@[D,G] scoring linear + softmax stays in
            # plain JAX glue; the BN hot path runs in the fused Pallas kernels.
            score = jax.nn.softmax(x @ self.w_group.T + self.b_group, axis=1)
            return _group_norm_fused(x, score, self.gamma, self.beta,
                                     skip_weight=self.skip_weight, eps=self.eps)
        raise Exception('the normalization has not been implemented')


# ---------------------------------------------------------------- reference

def _ref_batchnorm(x, gamma, beta, eps=1e-5):
    mean = x.mean(axis=0)
    var = x.var(axis=0)          # biased, as in torch BN training forward
    return (x - mean) / jnp.sqrt(var + eps) * gamma + beta


def _ref_pairnorm(x):
    xc = x - x.mean(axis=0)
    rownorm_mean = jnp.sqrt(1e-6 + (xc ** 2).sum(axis=1).mean())
    return xc / rownorm_mean


def _ref_group(x, mod):
    if mod.num_groups == 1:
        return x + _ref_batchnorm(x, mod.gamma, mod.beta, mod.eps) * mod.skip_weight
    n, d = x.shape
    g = mod.num_groups
    score = jax.nn.softmax(x @ mod.w_group.T + mod.b_group, axis=1)
    x_temp = (score[:, :, None] * x[:, None, :]).reshape(n, g * d)
    x_bn = _ref_batchnorm(x_temp, mod.gamma, mod.beta, mod.eps)
    return x + x_bn.reshape(n, g, d).sum(axis=1) * mod.skip_weight


# --------------------------------------------------------------------- main

if __name__ == "__main__":
    key = jax.random.PRNGKey(0)
    kx, kg, kx2, kx3 = jax.random.split(key, 4)
    dim_hidden, num_groups = 32, 4

    def check(name, got, want, rtol=1e-4, atol=1e-4):
        got = jax.block_until_ready(got)
        assert got.shape == want.shape, f"{name}: shape {got.shape} vs {want.shape}"
        assert jnp.allclose(got, want, rtol=rtol, atol=atol), f"{name} mismatch"

    x64 = jax.random.normal(kx, (64, dim_hidden), jnp.float32)

    # ---- default path (single-pass fused kernel for small slabs) ----------
    mod_none = BatchNormPallas(dim_hidden, 'None')
    assert bool(jnp.all(mod_none(x64) == x64))

    mod_b = BatchNormPallas(dim_hidden, 'batch')
    check("batch/fused", mod_b(x64), _ref_batchnorm(x64, mod_b.gamma, mod_b.beta))

    mod_p = BatchNormPallas(dim_hidden, 'pair')
    check("pair/fused", mod_p(x64), _ref_pairnorm(x64))

    mod_g1 = BatchNormPallas(dim_hidden, 'group', num_groups=1, skip_weight=0.005)
    check("group1/fused", mod_g1(x64), _ref_group(x64, mod_g1))

    mod_g4 = BatchNormPallas(dim_hidden, 'group', num_groups=num_groups,
                             skip_weight=0.005, key=kg)
    check("group4", mod_g4(x64), _ref_group(x64, mod_g4))

    # ---- force the tiled two-pass path (lane-packed stats + affine) -------
    _FUSED_MAX_F32_BYTES = 0     # disable the single-pass fast path
    _MAX_ROW_TILE = 32           # force multi-step grids at these tiny sizes

    check("batch/packed", mod_b(x64), _ref_batchnorm(x64, mod_b.gamma, mod_b.beta))
    check("group1/packed", mod_g1(x64), _ref_group(x64, mod_g1))

    x400 = jax.random.normal(kx2, (400, dim_hidden), jnp.float32)   # packs, multi-step
    check("pair/packed-multistep", mod_p(x400), _ref_pairnorm(x400))

    x397 = jax.random.normal(kx3, (397, dim_hidden), jnp.float32)   # ragged, un-packable
    check("batch/ragged", mod_b(x397), _ref_batchnorm(x397, mod_b.gamma, mod_b.beta))
    check("pair/ragged", mod_p(x397), _ref_pairnorm(x397))
    check("group4/ragged", mod_g4(x397), _ref_group(x397, mod_g4))

    # restore defaults
    _FUSED_MAX_F32_BYTES = 2 << 20
    _MAX_ROW_TILE = 8192

    print("KERNEL_OK")
</pallas_src>

<mosaic_0001>
module attributes {stable_mosaic.version = 11 : i64} {
  func.func @_fused_norm_kernel(%arg0: memref<64x32xf32, #tpu.memory_space<vmem>>, %arg1: memref<1x32xf32, #tpu.memory_space<vmem>>, %arg2: memref<1x32xf32, #tpu.memory_space<vmem>>, %arg3: memref<64x32xf32, #tpu.memory_space<vmem>>) attributes {dimension_semantics = [], scalar_prefetch = 0 : i64, scratch_operands = 0 : i64, tpu.core_type = #tpu.core_type<tc>} {
    %c0 = arith.constant 0 : index
    %c0_0 = arith.constant 0 : index
    %0 = vector.load %arg0[%c0, %c0_0] : memref<64x32xf32, #tpu.memory_space<vmem>>, vector<64x32xf32>
    %cst = arith.constant dense<0.000000e+00> : vector<32xf32>
    %1 = vector.multi_reduction <add>, %0, %cst [0] : vector<64x32xf32> to vector<32xf32>
    %2 = vector.shape_cast %1 : vector<32xf32> to vector<1x32xf32>
    %cst_1 = arith.constant 1.562500e-02 : f32
    %3 = vector.broadcast %cst_1 : f32 to vector<1x32xf32>
    %4 = arith.mulf %2, %3 : vector<1x32xf32>
    %5 = arith.mulf %0, %0 : vector<64x32xf32>
    %cst_2 = arith.constant dense<0.000000e+00> : vector<32xf32>
    %6 = vector.multi_reduction <add>, %5, %cst_2 [0] : vector<64x32xf32> to vector<32xf32>
    %7 = vector.shape_cast %6 : vector<32xf32> to vector<1x32xf32>
    %cst_3 = arith.constant 1.562500e-02 : f32
    %8 = vector.broadcast %cst_3 : f32 to vector<1x32xf32>
    %9 = arith.mulf %7, %8 : vector<1x32xf32>
    %10 = arith.mulf %4, %4 : vector<1x32xf32>
    %11 = arith.subf %9, %10 : vector<1x32xf32>
    %cst_4 = arith.constant 0.000000e+00 : f32
    %12 = vector.broadcast %cst_4 : f32 to vector<1x32xf32>
    %13 = arith.maximumf %11, %12 : vector<1x32xf32>
    %cst_5 = arith.constant 9.99999974E-6 : f32
    %14 = vector.broadcast %cst_5 : f32 to vector<1x32xf32>
    %15 = arith.addf %13, %14 : vector<1x32xf32>
    %16 = math.rsqrt %15 : vector<1x32xf32>
    %c0_6 = arith.constant 0 : index
    %c0_7 = arith.constant 0 : index
    %17 = vector.load %arg1[%c0_6, %c0_7] : memref<1x32xf32, #tpu.memory_space<vmem>>, vector<1x32xf32>
    %18 = arith.mulf %17, %16 : vector<1x32xf32>
    %19 = vector.broadcast %18 : vector<1x32xf32> to vector<64x32xf32>
    %20 = arith.mulf %0, %19 : vector<64x32xf32>
    %c0_8 = arith.constant 0 : index
    %c0_9 = arith.constant 0 : index
    %21 = vector.load %arg2[%c0_8, %c0_9] : memref<1x32xf32, #tpu.memory_space<vmem>>, vector<1x32xf32>
    %22 = arith.mulf %4, %18 : vector<1x32xf32>
    %23 = arith.subf %21, %22 : vector<1x32xf32>
    %24 = vector.broadcast %23 : vector<1x32xf32> to vector<64x32xf32>
    %25 = arith.addf %20, %24 : vector<64x32xf32>
    %c0_10 = arith.constant 0 : index
    %c0_11 = arith.constant 0 : index
    %26 = vector.load %arg3[%c0_10, %c0_11] : memref<64x32xf32, #tpu.memory_space<vmem>>, vector<64x32xf32>
    tpu.vector_store %arg3[%c0_10, %c0_11], %25 {strides = array<i32>} : memref<64x32xf32, #tpu.memory_space<vmem>>, vector<64x32xf32>,
    return
  }
}

</mosaic_0001>

<llo_original>
// kernel: tpu_custom_call.1
$region0: #{tpu_custom_call.1}
  #allocation0 [shape = 'u32[]', space=smem, size = 0x4, offset = 0x4, fixed_abs, tag = 'smem constant byte address 0x4 - core index']
  #allocation1 [shape = 'u32[144,128]{1,0:T(1,128)}', space=vmem, size = 0x12000, scoped, tag = 'internal scratch']
  %s0 = inlined_call_operand.vmem [shape: f32[64,32], index: 0, kind: input, shape index: {}]
  %s1 = inlined_call_operand.vmem [shape: f32[1,32], index: 1, kind: input, shape index: {}]
  %s2 = inlined_call_operand.vmem [shape: f32[1,32], index: 2, kind: input, shape index: {}]
  %s3 = inlined_call_operand.vmem [shape: f32[64,32], index: 3, kind: output, shape index: {}]
  %s4 = sld [smem:[#allocation0]]
  $region22: #{tpu_custom_call.1} parent=0
    _
  %s6 = ssub.s32 1, %s4
  %s7 = scalar_select 0, %s6, %s4
  // Predicated region
  $region2: #{tpu_custom_call.1} parent=0 // pred_check
    _
  $region3: #{tpu_custom_call.1} parent=0 // pred_check_branch
    %9 = sbr.rel (0) target = $region5
  $region4: #{tpu_custom_call.1} parent=0 // pred_region
    _
  $region5: #{tpu_custom_call.1} parent=0 // pred_fallthru
    _
  // Predicated region
  $region6: #{tpu_custom_call.1} parent=0 // pred_check
    _
  $region7: #{tpu_custom_call.1} parent=0 // pred_check_branch
    %11 = sbr.rel (0) target = $region9
  $region8: #{tpu_custom_call.1} parent=0 // pred_region
    _
  $region9: #{tpu_custom_call.1} parent=0 // pred_fallthru
    _
  // Predicated region
  $region10: #{tpu_custom_call.1} parent=0 // pred_check
    _
  $region11: #{tpu_custom_call.1} parent=0 // pred_check_branch
    %13 = sbr.rel (0) target = $region13
  $region12: #{tpu_custom_call.1} parent=0 // pred_region
    _
  $region13: #{tpu_custom_call.1} parent=0 // pred_fallthru
    _
  %v14 = vld [vmem:[%s0] sm:$0xff]
  %v15 = vld [vmem:[%s0 + $0x8] sm:$0xff]
  %v16 = vld [vmem:[%s0 + $0x10] sm:$0xff]
  %v17 = vld [vmem:[%s0 + $0x18] sm:$0xff]
  %v18 = vld [vmem:[%s0 + $0x20] sm:$0xff]
  %v19 = vld [vmem:[%s0 + $0x28] sm:$0xff]
  %v20 = vld [vmem:[%s0 + $0x30] sm:$0xff]
  %v21 = vld [vmem:[%s0 + $0x38] sm:$0xff]
  %vm22 = vcmask 261120
  %v23 = vsel %vm22, %v14, 0.0
  %v24 = vsel %vm22, %v15, 0.0
  %v25 = vadd.f32 %v23, %v24
  %v26 = vsel %vm22, %v16, 0.0
  %v27 = vadd.f32 %v25, %v26
  %v28 = vsel %vm22, %v17, 0.0
  %v29 = vadd.f32 %v27, %v28
  %v30 = vsel %vm22, %v18, 0.0
  %v31 = vadd.f32 %v29, %v30
  %v32 = vsel %vm22, %v19, 0.0
  %v33 = vadd.f32 %v31, %v32
  %v34 = vsel %vm22, %v20, 0.0
  %v35 = vadd.f32 %v33, %v34
  %v36 = vsel %vm22, %v21, 0.0
  %v37 = vadd.f32 %v35, %v36
  %v38 = vrot.slane %v37, 4
  %v39 = vadd.f32 %v37, %v38
  %v40 = vrot.slane %v39, 2
  %v41 = vadd.f32 %v39, %v40
  %v42 = vrot.slane %v41, 1
  %v43 = vadd.f32 %v41, %v42
  %v44 = vmul.f32 %v43, 0.015625
  %v45 = vmul.f32 %v14, %v14
  %v46 = vmul.f32 %v15, %v15
  %v47 = vmul.f32 %v16, %v16
  %v48 = vmul.f32 %v17, %v17
  %v49 = vmul.f32 %v18, %v18
  %v50 = vmul.f32 %v19, %v19
  %v51 = vmul.f32 %v20, %v20
  %v52 = vmul.f32 %v21, %v21
  %v53 = vsel %vm22, %v45, 0.0
  %v54 = vsel %vm22, %v46, 0.0
  %v55 = vadd.f32 %v53, %v54
  %v56 = vsel %vm22, %v47, 0.0
  %v57 = vadd.f32 %v55, %v56
  %v58 = vsel %vm22, %v48, 0.0
  %v59 = vadd.f32 %v57, %v58
  %v60 = vsel %vm22, %v49, 0.0
  %v61 = vadd.f32 %v59, %v60
  %v62 = vsel %vm22, %v50, 0.0
  %v63 = vadd.f32 %v61, %v62
  %v64 = vsel %vm22, %v51, 0.0
  %v65 = vadd.f32 %v63, %v64
  %v66 = vsel %vm22, %v52, 0.0
  %v67 = vadd.f32 %v65, %v66
  %v68 = vrot.slane %v67, 4
  %v69 = vadd.f32 %v67, %v68
  %v70 = vrot.slane %v69, 2
  %v71 = vadd.f32 %v69, %v70
  %v72 = vrot.slane %v71, 1
  %v73 = vadd.f32 %v71, %v72
  %v74 = vmul.f32 %v73, 0.015625
  %v75 = vmul.f32 %v44, %v44
  %v76 = vsub.f32 %v74, %v75
  %v77 = vmax.f32 %v76, 0.0
  %v78 = vadd.f32 %v77, 1e-05
  %v79 = vrsqrt.pop %v78
  %v80 = vld [vmem:[%s1] sm:$0x1]
  %v81 = vmul.f32 %v80, %v79
  %v83 = vlaneseq
  %v84 = vshrl.u32 %v83, 7
  %v85 = vsub.s32 0, %v84
  %v86 = vrot.slane %v81, %v85
  %v88 = vmul.f32 %v14, %v86
  %v89 = vmul.f32 %v15, %v86
  %v90 = vmul.f32 %v16, %v86
  %v91 = vmul.f32 %v17, %v86
  %v92 = vmul.f32 %v18, %v86
  %v93 = vmul.f32 %v19, %v86
  %v94 = vmul.f32 %v20, %v86
  %v95 = vmul.f32 %v21, %v86
  %v96 = vld [vmem:[%s2] sm:$0x1]
  %v97 = vmul.f32 %v44, %v81
  %v98 = vsub.f32 %v96, %v97
  %v100 = vlaneseq
  %v101 = vshrl.u32 %v100, 7
  %v102 = vsub.s32 0, %v101
  %v103 = vrot.slane %v98, %v102
  %v105 = vadd.f32 %v88, %v103
  %v106 = vadd.f32 %v89, %v103
  %v107 = vadd.f32 %v90, %v103
  %v108 = vadd.f32 %v91, %v103
  %v109 = vadd.f32 %v92, %v103
  %v110 = vadd.f32 %v93, %v103
  %v111 = vadd.f32 %v94, %v103
  %v112 = vadd.f32 %v95, %v103
  %113 = vst.msk [vmem:[%s3] sm:$0xff] %vm22, %v105
  %114 = vst.msk [vmem:[%s3 + $0x8] sm:$0xff] %vm22, %v106
  %115 = vst.msk [vmem:[%s3 + $0x10] sm:$0xff] %vm22, %v107
  %116 = vst.msk [vmem:[%s3 + $0x18] sm:$0xff] %vm22, %v108
  %117 = vst.msk [vmem:[%s3 + $0x20] sm:$0xff] %vm22, %v109
  %118 = vst.msk [vmem:[%s3 + $0x28] sm:$0xff] %vm22, %v110
  %119 = vst.msk [vmem:[%s3 + $0x30] sm:$0xff] %vm22, %v111
  %120 = vst.msk [vmem:[%s3 + $0x38] sm:$0xff] %vm22, %v112
  // Predicated region
  $region14: #{tpu_custom_call.1} parent=0 // pred_check
    _
  $region15: #{tpu_custom_call.1} parent=0 // pred_check_branch
    %122 = sbr.rel (0) target = $region17
  $region16: #{tpu_custom_call.1} parent=0 // pred_region
    _
  $region17: #{tpu_custom_call.1} parent=0 // pred_fallthru
    _
  // Predicated region
  $region18: #{tpu_custom_call.1} parent=0 // pred_check
    _
  $region19: #{tpu_custom_call.1} parent=0 // pred_check_branch
    %124 = sbr.rel (0) target = $region21
  $region20: #{tpu_custom_call.1} parent=0 // pred_region
    _
  $region21: #{tpu_custom_call.1} parent=0 // pred_fallthru
    _

</llo_original>
